<compile_context>
chip_gen: v7x
topology: tpu7x:2x2x1
jax: 0.10.0
libtpu: 0.0.40
codegen_flags: <defaults>
</compile_context>

<pallas_src>
import functools

import numpy as np
import jax
import jax.numpy as jnp
from jax import lax
from jax.experimental import pallas as pl
from jax.experimental.pallas import tpu as pltpu


def _qtconv_kernel(x_ref, w_ref, b_ref, o_ref, *, K, dilation, w_pad, h_out,
                   n_blk, mxu_bf16):
    # x_ref: (N_blk, C_in, FLAT)     zero-inserted + padded input (row-major HW)
    # w_ref: (C_out, K*K*C_in)       Hamilton weight, tap-major (kh, kw, c_in)
    # b_ref: (C_out, 1)
    # o_ref: (N_blk, C_out, Q)       lane-dense output; Q = h_out*w_pad, multiple of 128
    Q = h_out * w_pad
    mm_dtype = jnp.bfloat16 if mxu_bf16 else jnp.float32

    # im2col: per image K*K static lane slices concatenated along sublanes
    # (contraction dim), images concatenated along lanes (one wide MXU RHS).
    img_patches = []
    for b in range(n_blk):                                # static: n_blk small
        xv = x_ref[b]                                     # (C_in, FLAT)
        cols = []
        for kh in range(K):                               # static: K small
            for kw in range(K):
                # spatial flip of the conv_transpose weight folded into the shift
                start = ((K - 1 - kh) * dilation) * w_pad + (K - 1 - kw) * dilation
                cols.append(xv[:, start:start + Q])       # (C_in, Q) static slice
        img_patches.append(jnp.concatenate(cols, axis=0))  # (K*K*C_in, Q)
    patch = jnp.concatenate(img_patches, axis=1)          # (K*K*C_in, N_blk*Q)

    # Single fused MXU matmul, contraction dim = K*K*C_in.
    acc = jnp.dot(w_ref[...].astype(mm_dtype),
                  patch.astype(mm_dtype),
                  preferred_element_type=jnp.float32)     # (C_out, N_blk*Q)
    acc = acc + b_ref[...].astype(jnp.float32)            # (C_out, 1) broadcast

    for b in range(n_blk):
        # lane offsets are multiples of Q (>=128-aligned) -> unmasked stores
        o_ref[b] = acc[:, b * Q:(b + 1) * Q].astype(o_ref.dtype)


def _vmem_limit_bytes(n_blk, c_in, c_out, K, flat, q):
    """Explicit scoped-VMEM request, only when the default would be tight."""
    est = 4 * (2 * n_blk * c_in * flat            # double-buffered x block
               + 2 * c_out * (K * K * c_in + 1)   # weight + bias
               + 2 * n_blk * c_out * q            # double-buffered out block
               + (K * K * c_in + c_out) * n_blk * q)  # patch + acc intermediates
    if 2 * est <= (16 << 20):                     # fits the most conservative default
        return None
    return min(2 * est, 48 << 20)                 # stay well under v7x's 64 MiB


def quaternion_transpose_conv2d(x_nchw, r_w, i_w, j_w, k_w, bias,
                                stride, padding, output_padding, dilation,
                                n_blk=None, mxu_bf16=False):
    """Equivalent of quaternion_transpose_conv(...) for 4-D (NCHW) inputs."""
    # --- Hamilton block weight (glue, tiny) ---------------------------------
    row_r = jnp.concatenate([r_w, -i_w, -j_w, -k_w], axis=1)
    row_i = jnp.concatenate([i_w,  r_w, -k_w,  j_w], axis=1)
    row_j = jnp.concatenate([j_w,  k_w,  r_w, -i_w], axis=1)
    row_k = jnp.concatenate([k_w, -j_w,  i_w,  r_w], axis=1)
    W = jnp.concatenate([row_r, row_i, row_j, row_k], axis=0)  # (C_in, C_out, K, K)

    N, C_in, H_in, W_in = x_nchw.shape
    C_out, K = W.shape[1], W.shape[2]
    s, p, op, d = stride, padding, output_padding, dilation

    L = d * (K - 1) - p
    R = L + op
    # TODO(synk): p > d*(K-1) (L < 0) would need output cropping instead of this
    #             pad construction; not supported here.
    assert L >= 0 and R >= 0, "this kernel assumes dilation*(K-1) >= padding"
    H_out = (H_in - 1) * s - 2 * p + d * (K - 1) + op + 1
    W_out = (W_in - 1) * s - 2 * p + d * (K - 1) + op + 1

    # Lane-pad the per-row width so Q = H_out*W_pad is a multiple of 128:
    # every output sublane row then ends on a full vreg (no masked vst tails).
    w_pad_min = W_out + d * (K - 1)
    W_pad = w_pad_min
    while (H_out * W_pad) % 128 != 0:
        W_pad += 1
    extra_w = W_pad - w_pad_min
    H_pad = H_out + d * (K - 1)
    Q = H_out * W_pad

    # --- input: zero-insert (interior pad s-1) + edge pad, stay NCHW --------
    # One extra zero row at the bottom so every tap's flat slice of length Q
    # stays in bounds; extra right columns are zeros and only land in junk
    # output columns that get cropped.
    x_padded = lax.pad(x_nchw, jnp.zeros((), x_nchw.dtype),
                       ((0, 0, 0), (0, 0, 0),
                        (L, R + 1, s - 1), (L, R + extra_w, s - 1)))
    FLAT = (H_pad + 1) * W_pad
    x_flat = x_padded.reshape(N, C_in, FLAT)          # contiguous reshape: free

    # --- weight: (C_in, C_out, K, K) -> (C_out, K*K*C_in), tap-major --------
    # (spatial flip is handled by the kernel's tap offsets)
    w2 = jnp.transpose(W, (1, 2, 3, 0)).reshape(C_out, K * K * C_in)
    b2 = bias.reshape(C_out, 1)

    # --- batch folding: N_blk images per grid step ---------------------------
    # Keep >=2 "parallel" grid steps when the batch allows it (v7x megacore);
    # otherwise one fat step (v5e/v6e: the grid is a sequential loop anyway).
    if n_blk is None:
        n_blk = (N // 2) if (N >= 2 and N % 2 == 0) else 1
    assert N % n_blk == 0, "batch must be divisible by n_blk"
    num_steps = N // n_blk

    kernel = functools.partial(_qtconv_kernel, K=K, dilation=d,
                               w_pad=W_pad, h_out=H_out,
                               n_blk=n_blk, mxu_bf16=mxu_bf16)
    out_flat = pl.pallas_call(
        kernel,
        out_shape=jax.ShapeDtypeStruct((N, C_out, Q), x_nchw.dtype),
        grid_spec=pltpu.PrefetchScalarGridSpec(
            num_scalar_prefetch=0,
            grid=(num_steps,),
            in_specs=[
                pl.BlockSpec((n_blk, C_in, FLAT), lambda g: (g, 0, 0)),
                pl.BlockSpec((C_out, K * K * C_in), lambda g: (0, 0)),
                pl.BlockSpec((C_out, 1), lambda g: (0, 0)),
            ],
            out_specs=pl.BlockSpec((n_blk, C_out, Q), lambda g: (g, 0, 0)),
        ),
        compiler_params=pltpu.CompilerParams(
            dimension_semantics=("parallel",),
            vmem_limit_bytes=_vmem_limit_bytes(n_blk, C_in, C_out, K, FLAT, Q)),
    )(x_flat, w2, b2)

    # (N, C_out, H_out*W_pad) -> (N, C_out, H_out, W_pad) is a free contiguous
    # reshape; drop the junk columns (row wrap-around + lane padding) per row.
    out = out_flat.reshape(N, C_out, H_out, W_pad)[:, :, :, :W_out]
    return out


def _reference(x_nchw, r_w, i_w, j_w, k_w, bias, stride, padding,
               output_padding, dilation):
    """Pure-XLA reference for F.conv_transpose2d with the Hamilton weight."""
    row_r = jnp.concatenate([r_w, -i_w, -j_w, -k_w], axis=1)
    row_i = jnp.concatenate([i_w,  r_w, -k_w,  j_w], axis=1)
    row_j = jnp.concatenate([j_w,  k_w,  r_w, -i_w], axis=1)
    row_k = jnp.concatenate([k_w, -j_w,  i_w,  r_w], axis=1)
    W = jnp.concatenate([row_r, row_i, row_j, row_k], axis=0)
    K = W.shape[2]
    s, p, op, d = stride, padding, output_padding, dilation
    L = d * (K - 1) - p
    R = L + op
    rhs = jnp.transpose(W[:, :, ::-1, ::-1], (1, 0, 2, 3))  # (C_out, C_in, K, K)
    out = lax.conv_general_dilated(
        x_nchw.astype(jnp.float32), rhs.astype(jnp.float32),
        window_strides=(1, 1), padding=((L, R), (L, R)),
        lhs_dilation=(s, s), rhs_dilation=(d, d),
        dimension_numbers=("NCHW", "OIHW", "NCHW"))
    return out + bias.reshape(1, -1, 1, 1)


if __name__ == "__main__":
    # Module config (PyTorch): QuaternionTransposeConv(8, 8, kernel_size=3,
    #   stride=2, padding=1, output_padding=1, dilatation=1, bias=True)
    in_channels, out_channels = 8, 8
    K, stride, padding, output_padding, dilation = 3, 2, 1, 1, 1
    C_in_q, C_out_q = in_channels // 4, out_channels // 4
    N, H, Wsp = 2, 8, 8

    key = jax.random.PRNGKey(0)
    kx, kr, ki, kj, kk, kb = jax.random.split(key, 6)

    # Deterministic parameter init.  The original quaternion_init draws random
    # chi-distributed magnitudes / random axes; here we use a scaled normal with
    # the same 'he' sigma = 1/sqrt(2*(fan_in+fan_out)*K*K).
    # TODO(synk): exact quaternion_init / unitary_init RNG not reproduced.
    w_shape = (C_in_q, C_out_q, K, K)   # (in_q, out_q, kH, kW) — conv_transpose layout
    sigma = 1.0 / np.sqrt(2.0 * (C_in_q + C_out_q) * K * K)
    r_w = sigma * jax.random.normal(kr, w_shape, jnp.float32)
    i_w = sigma * jax.random.normal(ki, w_shape, jnp.float32)
    j_w = sigma * jax.random.normal(kj, w_shape, jnp.float32)
    k_w = sigma * jax.random.normal(kk, w_shape, jnp.float32)
    # reset_parameters() zeroes the bias; use a small random bias here so the
    # kernel's bias path is actually exercised (forward semantics are identical).
    bias = 0.1 * jax.random.normal(kb, (out_channels,), jnp.float32)

    x = jax.random.normal(kx, (N, in_channels, H, Wsp), jnp.float32)

    out = quaternion_transpose_conv2d(x, r_w, i_w, j_w, k_w, bias,
                                      stride, padding, output_padding, dilation)
    out = jax.block_until_ready(out)

    ref = _reference(x, r_w, i_w, j_w, k_w, bias,
                     stride, padding, output_padding, dilation)
    assert out.shape == ref.shape == (N, out_channels, 16, 16), out.shape
    np.testing.assert_allclose(np.asarray(out), np.asarray(ref),
                               rtol=1e-4, atol=1e-4)
    print("KERNEL_OK")
</pallas_src>

<mosaic_0001>
module attributes {stable_mosaic.version = 11 : i64} {
  func.func @_qtconv_kernel(%arg0: i32, %arg1: memref<1x8x456xf32, #tpu.memory_space<vmem>>, %arg2: memref<8x72xf32, #tpu.memory_space<vmem>>, %arg3: memref<8x1xf32, #tpu.memory_space<vmem>>, %arg4: memref<1x8x384xf32, #tpu.memory_space<vmem>>) attributes {dimension_semantics = [#tpu.dimension_semantics<parallel>], iteration_bounds = array<i64: 2>, scalar_prefetch = 0 : i64, scratch_operands = 0 : i64, tpu.core_type = #tpu.core_type<tc>, window_params = [{transform_indices = @transform_0, window_bounds = array<i64: 1, 8, 456>}, {pipeline_mode = #tpu.pipeline_mode<synchronous>, transform_indices = @transform_1, window_bounds = array<i64: 8, 72>}, {pipeline_mode = #tpu.pipeline_mode<synchronous>, transform_indices = @transform_2, window_bounds = array<i64: 8, 1>}, {transform_indices = @transform_3, window_bounds = array<i64: 1, 8, 384>}]} {
    %c0 = arith.constant 0 : index
    %c0_0 = arith.constant 0 : index
    %c0_1 = arith.constant 0 : index
    %0 = vector.load %arg1[%c0, %c0_0, %c0_1] : memref<1x8x456xf32, #tpu.memory_space<vmem>>, vector<1x8x456xf32>
    %1 = vector.shape_cast %0 : vector<1x8x456xf32> to vector<8x456xf32>
    %2 = vector.extract_strided_slice %1 {offsets = [0, 50], sizes = [8, 384], strides = [1, 1]} : vector<8x456xf32> to vector<8x384xf32>
    %3 = vector.extract_strided_slice %1 {offsets = [0, 49], sizes = [8, 384], strides = [1, 1]} : vector<8x456xf32> to vector<8x384xf32>
    %4 = vector.extract_strided_slice %1 {offsets = [0, 48], sizes = [8, 384], strides = [1, 1]} : vector<8x456xf32> to vector<8x384xf32>
    %5 = vector.extract_strided_slice %1 {offsets = [0, 26], sizes = [8, 384], strides = [1, 1]} : vector<8x456xf32> to vector<8x384xf32>
    %6 = vector.extract_strided_slice %1 {offsets = [0, 25], sizes = [8, 384], strides = [1, 1]} : vector<8x456xf32> to vector<8x384xf32>
    %7 = vector.extract_strided_slice %1 {offsets = [0, 24], sizes = [8, 384], strides = [1, 1]} : vector<8x456xf32> to vector<8x384xf32>
    %8 = vector.extract_strided_slice %1 {offsets = [0, 2], sizes = [8, 384], strides = [1, 1]} : vector<8x456xf32> to vector<8x384xf32>
    %9 = vector.extract_strided_slice %1 {offsets = [0, 1], sizes = [8, 384], strides = [1, 1]} : vector<8x456xf32> to vector<8x384xf32>
    %10 = vector.extract_strided_slice %1 {offsets = [0, 0], sizes = [8, 384], strides = [1, 1]} : vector<8x456xf32> to vector<8x384xf32>
    %11 = tpu.concatenate %2, %3, %4, %5, %6, %7, %8, %9, %10 in 0 : vector<8x384xf32>, vector<8x384xf32>, vector<8x384xf32>, vector<8x384xf32>, vector<8x384xf32>, vector<8x384xf32>, vector<8x384xf32>, vector<8x384xf32>, vector<8x384xf32> -> vector<72x384xf32>
    %c0_2 = arith.constant 0 : index
    %c0_3 = arith.constant 0 : index
    %12 = vector.load %arg2[%c0_2, %c0_3] : memref<8x72xf32, #tpu.memory_space<vmem>>, vector<8x72xf32>
    %cst = arith.constant dense<0.000000e+00> : vector<8x384xf32>
    %13 = tpu.matmul %12, %11, %cst {dimension_numbers = #tpu.dot_dimension_numbers<[1], [0], [0], [1], [0, 0, 1, 1], [], []>} : vector<8x72xf32>, vector<72x384xf32>, vector<8x384xf32> -> vector<8x384xf32>
    %c0_4 = arith.constant 0 : index
    %c0_5 = arith.constant 0 : index
    %14 = vector.load %arg3[%c0_4, %c0_5] : memref<8x1xf32, #tpu.memory_space<vmem>>, vector<8x1xf32>
    %15 = vector.broadcast %14 : vector<8x1xf32> to vector<8x384xf32>
    %16 = arith.addf %13, %15 : vector<8x384xf32>
    %c0_6 = arith.constant 0 : index
    %c0_7 = arith.constant 0 : index
    %c0_8 = arith.constant 0 : index
    %17 = vector.load %arg4[%c0_6, %c0_7, %c0_8] : memref<1x8x384xf32, #tpu.memory_space<vmem>>, vector<1x8x384xf32>
    %18 = vector.shape_cast %17 : vector<1x8x384xf32> to vector<8x384xf32>
    %19 = vector.shape_cast %16 : vector<8x384xf32> to vector<1x8x384xf32>
    tpu.vector_store %arg4[%c0_6, %c0_7, %c0_8], %19 {strides = array<i32>} : memref<1x8x384xf32, #tpu.memory_space<vmem>>, vector<1x8x384xf32>,
    return
  }
  func.func @transform_0(%arg0: i32) -> (i32, i32, i32) {
    %c0_i32 = arith.constant 0 : i32
    %c0_i32_0 = arith.constant 0 : i32
    %c0_i32_1 = arith.constant 0 : i32
    return %arg0, %c0_i32, %c0_i32_0 : i32, i32, i32
  }
  func.func @transform_1(%arg0: i32) -> (i32, i32) {
    %c0_i32 = arith.constant 0 : i32
    %c0_i32_0 = arith.constant 0 : i32
    %c0_i32_1 = arith.constant 0 : i32
    return %c0_i32, %c0_i32_0 : i32, i32
  }
  func.func @transform_2(%arg0: i32) -> (i32, i32) {
    %c0_i32 = arith.constant 0 : i32
    %c0_i32_0 = arith.constant 0 : i32
    %c0_i32_1 = arith.constant 0 : i32
    return %c0_i32, %c0_i32_0 : i32, i32
  }
  func.func @transform_3(%arg0: i32) -> (i32, i32, i32) {
    %c0_i32 = arith.constant 0 : i32
    %c0_i32_0 = arith.constant 0 : i32
    %c0_i32_1 = arith.constant 0 : i32
    return %arg0, %c0_i32, %c0_i32_0 : i32, i32, i32
  }
}

</mosaic_0001>

<llo_original>
// kernel: tpu_custom_call.1
$region0: #{tpu_custom_call.1}
  #allocation0 [shape = 'u32[]', space=smem, size = 0x4, offset = 0x4, fixed_abs, tag = 'smem constant byte address 0x4 - core index']
  #allocation1 [shape = 'u32[144,128]{1,0:T(1,128)}', space=vmem, size = 0x12000, scoped, tag = 'internal scratch']
  %s0 = inlined_call_operand.hbm [shape: f32[2,8,456], index: 0, kind: input, shape index: {}]
  %s1 = inlined_call_operand.vmem [shape: f32[8,72], index: 1, kind: input, shape index: {}]
  %s2 = inlined_call_operand.vmem [shape: f32[8,1], index: 2, kind: input, shape index: {}]
  %s3 = inlined_call_operand.hbm [shape: f32[2,8,384], index: 3, kind: output, shape index: {}]
  %s4 = sld [smem:[#allocation0]]
  $region49: #{tpu_custom_call.1} parent=0
    _
  %s6 = ssub.s32 1, %s4
  %s7 = scalar_select 0, %s6, %s4
  $region1: #{tpu_custom_call.1} parent=0
    #allocation2 [shape = 'u8[32768]{0}', space=vmem, size = 0x8000, scoped, tag = 'input window, operand 0']
    #allocation3 [shape = 's32[2]{0}', space=sflag, size = 0x8, scoped, tag = 'scoped memory for tpu_custom_call.1']
    #allocation4 [shape = 's32[2]{0}', space=sflag, size = 0x8, scoped, tag = 'scoped memory for tpu_custom_call.1']
    #allocation5 [shape = 'u8[24576]{0}', space=vmem, size = 0x6000, scoped, tag = 'output window, operand 0']
    %8 = vsyncpa [#allocation3], 0
    %s9 = scalar_lea.sflag [#allocation3], 1
    %10 = vsyncpa %s9, 0
    %11 = vsyncpa [#allocation4], 0
    %s12 = scalar_lea.sflag [#allocation4], 1
    %13 = vsyncpa %s12, 0
    loop: start=0, step=1, limit=4
    $region2: #{tpu_custom_call.1} parent=1 // loop_pre_header
      _
    $region3: #{tpu_custom_call.1} parent=1 // loop_header
      %s15 = sphi 0, %s19
      %p16 = scmp.ge.s32.totalorder %s15, 4
      %s25 = sphi 0, %s27
      %s28 = sphi 0, %s25
      %s29 = sphi 0, %s28
      %s45 = sphi 0, %s29
      %s49 = sphi 0, %s49
      %s51 = sphi 0, %s49
      %s52 = sphi 0, %s51
      %s66 = sphi 0, %s52
      %s70 = sphi 0, %s70
      %s72 = sphi 0, %s70
      %s73 = sphi 0, %s72
      %s87 = sphi 0, %s73
      %s93 = sphi 0, %s95
      %s96 = sphi 0, %s93
      %s97 = sphi 0, %s96
      %s113 = sphi 0, %s97
    $region4: #{tpu_custom_call.1} parent=1 // loop_header_branch
      %18 = sbr.rel (%p16) target = $region8
    $region5: #{tpu_custom_call.1} parent=1 // loop_body
      %s20 = ssub.s32 %s15, 1
      %s21 = ssub.s32 %s15, 2
      %s22 = sadd.s32 %s15, 1
      %s23 = ssub.s32 %s15, %s22
      %p24 = scmp.eq.s32.totalorder %s23, 0
      %s26 = sadd.s32 %s25, 1
      %s27 = scalar_select %p24, %s25, %s26
      %p30 = pneg %p24
      %p31 = scmp.eq.s32.totalorder %s15, 1
      %p32 = por %p30, %p31
      %p33 = scmp.ne.s32.totalorder %s25, %s28
      %p34 = scmp.eq.s32.totalorder %s15, 0
      %p35 = por %p33, %p34
      %p36 = scmp.ne.s32.totalorder %s25, %s28
      %p37 = scmp.eq.s32.totalorder %s20, 1
      %p38 = por %p36, %p37
      %p39 = scmp.ne.s32.totalorder %s28, %s29
      %p40 = scmp.eq.s32.totalorder %s20, 0
      %p41 = por %p39, %p40
      %p42 = scmp.ne.s32.totalorder %s28, %s29
      %p43 = scmp.eq.s32.totalorder %s21, 1
      %p44 = por %p42, %p43
      %p46 = scmp.ne.s32.totalorder %s29, %s45
      %p47 = scmp.eq.s32.totalorder %s21, 0
      %p48 = por %p46, %p47
      %s50 = sadd.s32 %s49, 1
      %p53 = scmp.eq.s32.totalorder %s15, 1
      %p54 = scmp.ne.s32.totalorder %s49, %s51
      %p55 = scmp.eq.s32.totalorder %s15, 0
      %p56 = por %p54, %p55
      %p57 = scmp.ne.s32.totalorder %s49, %s51
      %p58 = scmp.eq.s32.totalorder %s20, 1
      %p59 = por %p57, %p58
      %p60 = scmp.ne.s32.totalorder %s51, %s52
      %p61 = scmp.eq.s32.totalorder %s20, 0
      %p62 = por %p60, %p61
      %p63 = scmp.ne.s32.totalorder %s51, %s52
      %p64 = scmp.eq.s32.totalorder %s21, 1
      %p65 = por %p63, %p64
      %p67 = scmp.ne.s32.totalorder %s52, %s66
      %p68 = scmp.eq.s32.totalorder %s21, 0
      %p69 = por %p67, %p68
      %s71 = sadd.s32 %s70, 1
      %p74 = scmp.eq.s32.totalorder %s15, 1
      %p75 = scmp.ne.s32.totalorder %s70, %s72
      %p76 = scmp.eq.s32.totalorder %s15, 0
      %p77 = por %p75, %p76
      %p78 = scmp.ne.s32.totalorder %s70, %s72
      %p79 = scmp.eq.s32.totalorder %s20, 1
      %p80 = por %p78, %p79
      %p81 = scmp.ne.s32.totalorder %s72, %s73
      %p82 = scmp.eq.s32.totalorder %s20, 0
      %p83 = por %p81, %p82
      %p84 = scmp.ne.s32.totalorder %s72, %s73
      %p85 = scmp.eq.s32.totalorder %s21, 1
      %p86 = por %p84, %p85
      %p88 = scmp.ne.s32.totalorder %s73, %s87
      %p89 = scmp.eq.s32.totalorder %s21, 0
      %p90 = por %p88, %p89
      %s91 = ssub.s32 %s15, %s22
      %p92 = scmp.eq.s32.totalorder %s91, 0
      %s94 = sadd.s32 %s93, 1
      %s95 = scalar_select %p92, %s93, %s94
      %p98 = pneg %p92
      %p99 = scmp.eq.s32.totalorder %s15, 1
      %p100 = por %p98, %p99
      %p101 = scmp.ne.s32.totalorder %s93, %s96
      %p102 = scmp.eq.s32.totalorder %s15, 0
      %p103 = por %p101, %p102
      %p104 = scmp.ne.s32.totalorder %s93, %s96
      %p105 = scmp.eq.s32.totalorder %s20, 1
      %p106 = por %p104, %p105
      %p107 = scmp.ne.s32.totalorder %s96, %s97
      %p108 = scmp.eq.s32.totalorder %s20, 0
      %p109 = por %p107, %p108
      %p110 = scmp.ne.s32.totalorder %s96, %s97
      %p111 = scmp.eq.s32.totalorder %s21, 1
      %p112 = por %p110, %p111
      %p114 = scmp.ne.s32.totalorder %s97, %s113
      %p115 = scmp.eq.s32.totalorder %s21, 0
      %p116 = por %p114, %p115
      %p117 = scmp.le.s32.totalorder 1, %s15
      %p118 = scmp.lt.s32.totalorder %s15, 3
      %p119 = pnand %p117, %p118
      %p120 = pneg %p119
      // Predicated region
      $region9: #{tpu_custom_call.1} parent=5 // pred_check
        _
      $region10: #{tpu_custom_call.1} parent=5 // pred_check_branch
        %122 = sbr.rel (%p119) target = $region12
      $region11: #{tpu_custom_call.1} parent=5 // pred_region
        %s123 = ssub.s32 %s15, 1
        // Predicated region
        $region13: #{tpu_custom_call.1} parent=11 // pred_check
          %p124 = pneg %p62
        $region14: #{tpu_custom_call.1} parent=11 // pred_check_branch
          %126 = sbr.rel (%p124) target = $region16
        $region15: #{tpu_custom_call.1} parent=11 // pred_region
          _
        $region16: #{tpu_custom_call.1} parent=11 // pred_fallthru
          _
        // Predicated region
        $region17: #{tpu_custom_call.1} parent=11 // pred_check
          %p127 = pneg %p83
        $region18: #{tpu_custom_call.1} parent=11 // pred_check_branch
          %129 = sbr.rel (%p127) target = $region20
        $region19: #{tpu_custom_call.1} parent=11 // pred_region
          _
        $region20: #{tpu_custom_call.1} parent=11 // pred_fallthru
          _
      $region12: #{tpu_custom_call.1} parent=5 // pred_fallthru
        _
      %p130 = scmp.lt.s32.totalorder %s15, 2
      // Predicated region
      $region21: #{tpu_custom_call.1} parent=5 // pred_check
        %p131 = pneg %p130
      $region22: #{tpu_custom_call.1} parent=5 // pred_check_branch
        %133 = sbr.rel (%p131) target = $region24
      $region23: #{tpu_custom_call.1} parent=5 // pred_region
        // Predicated region
        $region25: #{tpu_custom_call.1} parent=23 // pred_check
          %p134 = pneg %p35
        $region26: #{tpu_custom_call.1} parent=23 // pred_check_branch
          %136 = sbr.rel (%p134) target = $region28
        $region27: #{tpu_custom_call.1} parent=23 // pred_region
          %s137 = sand.u32 %s25, 1
          %s138 = scalar_lea.sflag [#allocation3], %s137
          %s139 = sand.u32 %s25, 1
          %s140 = smul.addr %s139, 32
          %s141 = scalar_lea.vmem [#allocation2], %s140
          %s143 = ssub.s32 512, 512
          %144 = vsyncadd %s138, %s143
          %s145 = smul.addr %s15, 4
          %s146 = smul.addr %s145, 128
          %s147 = scalar_lea.hbm %s0, %s146
          %s149 = sshll.u32 %s141, 4
          %s150 = int_to_ptr.vmem [resolvable:$true] %s149
          %152 = dma.hbm_to_vmem [thread:$0]  %s147, 512, %s150, %s138
        $region28: #{tpu_custom_call.1} parent=23 // pred_fallthru
          _
      $region24: #{tpu_custom_call.1} parent=5 // pred_fallthru
        _
      %p153 = scmp.le.s32.totalorder 1, %s15
      %p154 = scmp.lt.s32.totalorder %s15, 3
      %p155 = pnand %p153, %p154
      %p156 = pneg %p155
      // Predicated region
      $region29: #{tpu_custom_call.1} parent=5 // pred_check
        _
      $region30: #{tpu_custom_call.1} parent=5 // pred_check_branch
        %158 = sbr.rel (%p155) target = $region32
      $region31: #{tpu_custom_call.1} parent=5 // pred_region
        %s159 = ssub.s32 %s15, 1
        %s160 = sand.u32 %s28, 1
        %s161 = scalar_lea.sflag [#allocation3], %s160
        %s162 = sand.u32 %s28, 1
        %s163 = smul.addr %s162, 32
        %s164 = scalar_lea.vmem [#allocation2], %s163
        // Predicated region
        $region33: #{tpu_custom_call.1} parent=31 // pred_check
          %p165 = pneg %p41
        $region34: #{tpu_custom_call.1} parent=31 // pred_check_branch
          %167 = sbr.rel (%p165) target = $region36
        $region35: #{tpu_custom_call.1} parent=31 // pred_region
          %168 = dma.done %s161, 512
        $region36: #{tpu_custom_call.1} parent=31 // pred_fallthru
          _
        %s169 = sand.u32 %s28, 1
        %s170 = scalar_lea.sflag [#allocation3], %s169
        %s171 = sand.u32 %s28, 1
        %s172 = smul.addr %s171, 32
        %s173 = scalar_lea.vmem [#allocation2], %s172
        %p174 = pneg %p41
        %p175 = pneg %p38
        %p176 = pneg %p62
        %p177 = pneg %p59
        %p178 = pneg %p83
        %p179 = pneg %p80
        %p180 = pneg %p109
        %p181 = pneg %p106
        %s182 = sand.u32 %s96, 1
        %s183 = scalar_lea.sflag [#allocation4], %s182
        %s184 = sand.u32 %s96, 1
        %s185 = smul.addr %s184, 24
        %s186 = scalar_lea.vmem [#allocation5], %s185
        %v187 = vld [vmem:[%s164] sm:$0xff]
        %v188 = vld [vmem:[%s164 + $0x8] sm:$0xff]
        %v189 = vld [vmem:[%s164 + $0x10] sm:$0xff]
        %v190 = vld [vmem:[%s164 + $0x18] sm:$0xff]
        %195 = vrot.lane.b32.xlu0 %v187, 1
        %v196 = vpop.permute.xlu0 %195
        %197 = vrot.lane.b32.xlu0 %v188, 1
        %v198 = vpop.permute.xlu0 %197
        %199 = vrot.lane.b32.xlu0 %v189, 1
        %v200 = vpop.permute.xlu0 %199
        %201 = vrot.lane.b32.xlu0 %v190, 1
        %v202 = vpop.permute.xlu0 %201
        %vm203 = vcmask 7168
        %v204 = vsel %vm203, %v196, %v198
        %v205 = vsel %vm203, %v198, %v200
        %v206 = vsel %vm203, %v200, %v202
        %207 = vrot.lane.b32.xlu0 %v187, 2
        %v208 = vpop.permute.xlu0 %207
        %209 = vrot.lane.b32.xlu0 %v188, 2
        %v210 = vpop.permute.xlu0 %209
        %211 = vrot.lane.b32.xlu0 %v189, 2
        %v212 = vpop.permute.xlu0 %211
        %213 = vrot.lane.b32.xlu0 %v190, 2
        %v214 = vpop.permute.xlu0 %213
        %vm215 = vcmask 15360
        %v216 = vsel %vm215, %v208, %v210
        %v217 = vsel %vm215, %v210, %v212
        %v218 = vsel %vm215, %v212, %v214
        %219 = vrot.lane.b32.xlu0 %v187, 24
        %v220 = vpop.permute.xlu0 %219
        %221 = vrot.lane.b32.xlu0 %v188, 24
        %v222 = vpop.permute.xlu0 %221
        %223 = vrot.lane.b32.xlu0 %v189, 24
        %v224 = vpop.permute.xlu0 %223
        %225 = vrot.lane.b32.xlu0 %v190, 24
        %v226 = vpop.permute.xlu0 %225
        %vm227 = vcmask 195584
        %v228 = vsel %vm227, %v220, %v222
        %v229 = vsel %vm227, %v222, %v224
        %v230 = vsel %vm227, %v224, %v226
        %231 = vrot.lane.b32.xlu0 %v187, 25
        %v232 = vpop.permute.xlu0 %231
        %233 = vrot.lane.b32.xlu0 %v188, 25
        %v234 = vpop.permute.xlu0 %233
        %235 = vrot.lane.b32.xlu0 %v189, 25
        %v236 = vpop.permute.xlu0 %235
        %237 = vrot.lane.b32.xlu0 %v190, 25
        %v238 = vpop.permute.xlu0 %237
        %vm239 = vcmask 203776
        %v240 = vsel %vm239, %v232, %v234
        %v241 = vsel %vm239, %v234, %v236
        %v242 = vsel %vm239, %v236, %v238
        %243 = vrot.lane.b32.xlu0 %v187, 26
        %v244 = vpop.permute.xlu0 %243
        %245 = vrot.lane.b32.xlu0 %v188, 26
        %v246 = vpop.permute.xlu0 %245
        %247 = vrot.lane.b32.xlu0 %v189, 26
        %v248 = vpop.permute.xlu0 %247
        %249 = vrot.lane.b32.xlu0 %v190, 26
        %v250 = vpop.permute.xlu0 %249
        %vm251 = vcmask 211968
        %v252 = vsel %vm251, %v244, %v246
        %v253 = vsel %vm251, %v246, %v248
        %v254 = vsel %vm251, %v248, %v250
        %255 = vrot.lane.b32.xlu0 %v187, 48
        %v256 = vpop.permute.xlu0 %255
        %257 = vrot.lane.b32.xlu0 %v188, 48
        %v258 = vpop.permute.xlu0 %257
        %259 = vrot.lane.b32.xlu0 %v189, 48
        %v260 = vpop.permute.xlu0 %259
        %261 = vrot.lane.b32.xlu0 %v190, 48
        %v262 = vpop.permute.xlu0 %261
        %vm263 = vcmask 392192
        %v264 = vsel %vm263, %v256, %v258
        %v265 = vsel %vm263, %v258, %v260
        %v266 = vsel %vm263, %v260, %v262
        %267 = vrot.lane.b32.xlu0 %v187, 49
        %v268 = vpop.permute.xlu0 %267
        %269 = vrot.lane.b32.xlu0 %v188, 49
        %v270 = vpop.permute.xlu0 %269
        %271 = vrot.lane.b32.xlu0 %v189, 49
        %v272 = vpop.permute.xlu0 %271
        %273 = vrot.lane.b32.xlu0 %v190, 49
        %v274 = vpop.permute.xlu0 %273
        %vm275 = vcmask 400384
        %v276 = vsel %vm275, %v268, %v270
        %v277 = vsel %vm275, %v270, %v272
        %v278 = vsel %vm275, %v272, %v274
        %279 = vrot.lane.b32.xlu0 %v187, 50
        %v280 = vpop.permute.xlu0 %279
        %281 = vrot.lane.b32.xlu0 %v188, 50
        %v282 = vpop.permute.xlu0 %281
        %283 = vrot.lane.b32.xlu0 %v189, 50
        %v284 = vpop.permute.xlu0 %283
        %vm285 = vcmask 408576
        %v286 = vsel %vm285, %v280, %v282
        %v287 = vsel %vm285, %v282, %v284
        %v288 = vld [vmem:[%s1] sm:$0xff]
        %v289 = vld [vmem:[%s2] sm:$0xff]
        %291 = vset.pattern.permute.xlu0 0
        %292 = vperm.xlu0 %291, %v289
        %v293 = vpop.permute.xlu0 %292
        %295 = vrot.lane.b32.xlu0 %v187, 78
        %v296 = vpop.permute.xlu0 %295
        %297 = vrot.lane.b32.xlu0 %v188, 78
        %v298 = vpop.permute.xlu0 %297
        %299 = vrot.lane.b32.xlu0 %v189, 78
        %v300 = vpop.permute.xlu0 %299
        %301 = vrot.lane.b32.xlu0 %v190, 78
        %v302 = vpop.permute.xlu0 %301
        %303 = vrot.lane.b32.xlu0 %v196, 78
        %v304 = vpop.permute.xlu0 %303
        %305 = vrot.lane.b32.xlu0 %v204, 78
        %v306 = vpop.permute.xlu0 %305
        %307 = vrot.lane.b32.xlu0 %v205, 78
        %v308 = vpop.permute.xlu0 %307
        %309 = vrot.lane.b32.xlu0 %v206, 78
        %v310 = vpop.permute.xlu0 %309
        %311 = vrot.lane.b32.xlu0 %v208, 78
        %v312 = vpop.permute.xlu0 %311
        %313 = vrot.lane.b32.xlu0 %v216, 78
        %v314 = vpop.permute.xlu0 %313
        %315 = vrot.lane.b32.xlu0 %v217, 78
        %v316 = vpop.permute.xlu0 %315
        %317 = vrot.lane.b32.xlu0 %v218, 78
        %v318 = vpop.permute.xlu0 %317
        %319 = vrot.lane.b32.xlu0 %v220, 78
        %v320 = vpop.permute.xlu0 %319
        %321 = vrot.lane.b32.xlu0 %v228, 78
        %v322 = vpop.permute.xlu0 %321
        %323 = vrot.lane.b32.xlu0 %v229, 78
        %v324 = vpop.permute.xlu0 %323
        %325 = vrot.lane.b32.xlu0 %v230, 78
        %v326 = vpop.permute.xlu0 %325
        %327 = vrot.lane.b32.xlu0 %v232, 78
        %v328 = vpop.permute.xlu0 %327
        %329 = vrot.lane.b32.xlu0 %v240, 78
        %v330 = vpop.permute.xlu0 %329
        %331 = vrot.lane.b32.xlu0 %v241, 78
        %v332 = vpop.permute.xlu0 %331
        %333 = vrot.lane.b32.xlu0 %v242, 78
        %v334 = vpop.permute.xlu0 %333
        %335 = vrot.lane.b32.xlu0 %v244, 78
        %v336 = vpop.permute.xlu0 %335
        %337 = vrot.lane.b32.xlu0 %v252, 78
        %v338 = vpop.permute.xlu0 %337
        %339 = vrot.lane.b32.xlu0 %v253, 78
        %v340 = vpop.permute.xlu0 %339
        %341 = vrot.lane.b32.xlu0 %v254, 78
        %v342 = vpop.permute.xlu0 %341
        %343 = vrot.lane.b32.xlu0 %v256, 78
        %v344 = vpop.permute.xlu0 %343
        %345 = vrot.lane.b32.xlu0 %v264, 78
        %v346 = vpop.permute.xlu0 %345
        %347 = vrot.lane.b32.xlu0 %v265, 78
        %v348 = vpop.permute.xlu0 %347
        %349 = vrot.lane.b32.xlu0 %v266, 78
        %v350 = vpop.permute.xlu0 %349
        %351 = vrot.lane.b32.xlu0 %v268, 78
        %v352 = vpop.permute.xlu0 %351
        %353 = vrot.lane.b32.xlu0 %v276, 78
        %v354 = vpop.permute.xlu0 %353
        %355 = vrot.lane.b32.xlu0 %v277, 78
        %v356 = vpop.permute.xlu0 %355
        %357 = vrot.lane.b32.xlu0 %v278, 78
        %v358 = vpop.permute.xlu0 %357
        %359 = vrot.lane.b32.xlu0 %v280, 78
        %v360 = vpop.permute.xlu0 %359
        %361 = vrot.lane.b32.xlu0 %v286, 78
        %v362 = vpop.permute.xlu0 %361
        %363 = vrot.lane.b32.xlu0 %v287, 78
        %v364 = vpop.permute.xlu0 %363
        %365 = vrot.lane.b32.xlu0 %v284, 78
        %v366 = vpop.permute.xlu0 %365
        %vm367 = vcmask 637952
        %v368 = vsel %vm367, %v296, %v298
        %v369 = vsel %vm367, %v298, %v300
        %v370 = vsel %vm367, %v300, %v302
        %v371 = vsel %vm367, %v304, %v306
        %v372 = vsel %vm367, %v306, %v308
        %v373 = vsel %vm367, %v308, %v310
        %v374 = vsel %vm367, %v312, %v314
        %v375 = vsel %vm367, %v314, %v316
        %v376 = vsel %vm367, %v316, %v318
        %v377 = vsel %vm367, %v320, %v322
        %v378 = vsel %vm367, %v322, %v324
        %v379 = vsel %vm367, %v324, %v326
        %v380 = vsel %vm367, %v328, %v330
        %v381 = vsel %vm367, %v330, %v332
        %v382 = vsel %vm367, %v332, %v334
        %v383 = vsel %vm367, %v336, %v338
        %v384 = vsel %vm367, %v338, %v340
        %v385 = vsel %vm367, %v340, %v342
        %v386 = vsel %vm367, %v344, %v346
        %v387 = vsel %vm367, %v346, %v348
        %v388 = vsel %vm367, %v348, %v350
        %v389 = vsel %vm367, %v352, %v354
        %v390 = vsel %vm367, %v354, %v356
        %v391 = vsel %vm367, %v356, %v358
        %v392 = vsel %vm367, %v360, %v362
        %v393 = vsel %vm367, %v362, %v364
        %v394 = vsel %vm367, %v364, %v366
        %vm422 = vcmask 588800
        %v424 = vsel %vm422, %v288, 0
        %426 = vmatprep.subr.mxu0 %v369
        %427 = vmatpush1.msra.mxu0 %v368
        %428 = vmatprep.subr.mxu0 %v372
        %429 = vmatpush1.msra.mxu0 %v371
        %430 = vmatprep.subr.mxu0 %v375
        %431 = vmatpush1.msra.mxu0 %v374
        %432 = vmatprep.subr.mxu0 %v378
        %433 = vmatpush1.msra.mxu0 %v377
        %434 = vmatprep.subr.mxu0 %v381
        %435 = vmatpush1.msra.mxu0 %v380
        %436 = vmatprep.subr.mxu0 %v384
        %437 = vmatpush1.msra.mxu0 %v383
        %438 = vmatprep.subr.mxu0 %v387
        %439 = vmatpush1.msra.mxu0 %v386
        %440 = vmatprep.subr.mxu0 %v390
        %441 = vmatpush1.msra.mxu0 %v389
        %442 = vmatprep.subr.mxu0 %v393
        %443 = vmatpush1.msra.mxu0 %v392
        %444 = vmatprep.subr.mxu0 0.0
        %445 = vmatpush1.msra.mxu0 0.0
        %446 = vmatprep.subr.mxu0 0.0
        %447 = vmatpush1.msra.mxu0 0.0
        %448 = vmatprep.subr.mxu0 0.0
        %449 = vmatpush1.msra.mxu0 0.0
        %450 = vmatprep.subr.mxu0 0.0
        %451 = vmatpush1.msra.mxu0 0.0
        %452 = vmatprep.subr.mxu0 0.0
        %453 = vmatpush1.msra.mxu0 0.0
        %454 = vmatprep.subr.mxu0 0.0
        %455 = vmatpush1.msra.mxu0 0.0
        %456 = vmatprep.subr.mxu0 0.0
        %457 = vmatpush1.msra.mxu0 0.0
        %458 = vmatprep.subr.mxu0 0.0
        %459 = vmatpush1.msra.mxu0 0.0
        %460 = vmatprep.subr.mxu0 0.0
        %461 = vmatpush1.msra.mxu0 0.0
        %462 = vmatprep.subr.mxu0 0.0
        %463 = vmatpush1.msra.mxu0 0.0
        %464 = vmatprep.subr.mxu0 0.0
        %465 = vmatpush1.msra.mxu0 0.0
        %466 = vmatprep.subr.mxu0 0.0
        %467 = vmatpush1.msra.mxu0 0.0
        %468 = vmatprep.subr.mxu0 0.0
        %469 = vmatpush1.msra.mxu0 0.0
        %470 = vmatprep.subr.mxu0 0.0
        %471 = vmatpush1.msra.mxu0 0.0
        %472 = vmatprep.subr.mxu0 0.0
        %473 = vmatpush1.msra.mxu0 0.0
        %474 = vmatprep.subr.mxu0 0.0
        %475 = vmatpush1.msra.mxu0 0.0
        %476 = vmatprep.subr.mxu0 0.0
        %477 = vmatpush1.msra.mxu0 0.0
        %478 = vmatprep.subr.mxu0 0.0
        %479 = vmatpush1.msra.mxu0 0.0
        %480 = vmatprep.subr.mxu0 0.0
        %481 = vmatpush1.msra.mxu0 0.0
        %482 = vmatprep.subr.mxu0 0.0
        %483 = vmatpush1.msra.mxu0 0.0
        %484 = vmatprep.subr.mxu0 0.0
        %485 = vmatpush1.msra.mxu0 0.0
        %486 = vmatprep.subr.mxu0 0.0
        %487 = vmatpush1.msra.mxu0 0.0
        %488 = vmatprep.subr.mxu0 0.0
        %489 = vmatpush1.msra.mxu0 0.0
        %490 = vmatprep.mubr.f32.mxu0 0.0
        %491 = vmatmul.mubr.f32.gmra.mrb[0].mxu0 %v424
        %v492 = vpop.f32.mrb[0].mxu0
        %v493 = vadd.f32 %v293, %v492
        %v494 = vpop.f32.mrb[0].mxu0
        %v495 = vadd.f32 %v293, %v494
        %496 = vdwg.mxu0
        %497 = vmatprep.subr.mxu0 0.0
        %498 = vmatpush1.msra.mxu0 %v370
        %499 = vmatprep.subr.mxu0 0.0
        %500 = vmatpush1.msra.mxu0 %v373
        %501 = vmatprep.subr.mxu0 0.0
        %502 = vmatpush1.msra.mxu0 %v376
        %503 = vmatprep.subr.mxu0 0.0
        %504 = vmatpush1.msra.mxu0 %v379
        %505 = vmatprep.subr.mxu0 0.0
        %506 = vmatpush1.msra.mxu0 %v382
        %507 = vmatprep.subr.mxu0 0.0
        %508 = vmatpush1.msra.mxu0 %v385
        %509 = vmatprep.subr.mxu0 0.0
        %510 = vmatpush1.msra.mxu0 %v388
        %511 = vmatprep.subr.mxu0 0.0
        %512 = vmatpush1.msra.mxu0 %v391
        %513 = vmatprep.subr.mxu0 0.0
        %514 = vmatpush1.msra.mxu0 %v394
        %515 = vmatprep.subr.mxu0 0.0
        %516 = vmatpush1.msra.mxu0 0.0
        %517 = vmatprep.subr.mxu0 0.0
        %518 = vmatpush1.msra.mxu0 0.0
        %519 = vmatprep.subr.mxu0 0.0
        %520 = vmatpush1.msra.mxu0 0.0
        %521 = vmatprep.subr.mxu0 0.0
        %522 = vmatpush1.msra.mxu0 0.0
        %523 = vmatprep.subr.mxu0 0.0
        %524 = vmatpush1.msra.mxu0 0.0
        %525 = vmatprep.subr.mxu0 0.0
        %526 = vmatpush1.msra.mxu0 0.0
        %527 = vmatprep.subr.mxu0 0.0
        %528 = vmatpush1.msra.mxu0 0.0
        %529 = vmatprep.subr.mxu0 0.0
        %530 = vmatpush1.msra.mxu0 0.0
        %531 = vmatprep.subr.mxu0 0.0
        %532 = vmatpush1.msra.mxu0 0.0
        %533 = vmatprep.subr.mxu0 0.0
        %534 = vmatpush1.msra.mxu0 0.0
        %535 = vmatprep.subr.mxu0 0.0
        %536 = vmatpush1.msra.mxu0 0.0
        %537 = vmatprep.subr.mxu0 0.0
        %538 = vmatpush1.msra.mxu0 0.0
        %539 = vmatprep.subr.mxu0 0.0
        %540 = vmatpush1.msra.mxu0 0.0
        %541 = vmatprep.subr.mxu0 0.0
        %542 = vmatpush1.msra.mxu0 0.0
        %543 = vmatprep.subr.mxu0 0.0
        %544 = vmatpush1.msra.mxu0 0.0
        %545 = vmatprep.subr.mxu0 0.0
        %546 = vmatpush1.msra.mxu0 0.0
        %547 = vmatprep.subr.mxu0 0.0
        %548 = vmatpush1.msra.mxu0 0.0
        %549 = vmatprep.subr.mxu0 0.0
        %550 = vmatpush1.msra.mxu0 0.0
        %551 = vmatprep.subr.mxu0 0.0
        %552 = vmatpush1.msra.mxu0 0.0
        %553 = vmatprep.subr.mxu0 0.0
        %554 = vmatpush1.msra.mxu0 0.0
        %555 = vmatprep.subr.mxu0 0.0
        %556 = vmatpush1.msra.mxu0 0.0
        %557 = vmatprep.subr.mxu0 0.0
        %558 = vmatpush1.msra.mxu0 0.0
        %559 = vmatprep.subr.mxu0 0.0
        %560 = vmatpush1.msra.mxu0 0.0
        %561 = vmatprep.mubr.f32.mxu0 0.0
        %562 = vmatmul.mubr.f32.gmra.mrb[0].mxu0 %v424
        %v563 = vpop.f32.mrb[0].mxu0
        %v564 = vadd.f32 %v293, %v563
        %v565 = vpop.f32.mrb[0].mxu0
        %566 = vdwg.mxu0
        %567 = vst [vmem:[%s186] sm:$0xff] %v493
        %568 = vst [vmem:[%s186 + $0x8] sm:$0xff] %v495
        %569 = vst [vmem:[%s186 + $0x10] sm:$0xff] %v564
        %s570 = sand.u32 %s96, 1
        %s571 = scalar_lea.sflag [#allocation4], %s570
        %s572 = sand.u32 %s96, 1
        %s573 = smul.addr %s572, 24
        %s574 = scalar_lea.vmem [#allocation5], %s573
        // Predicated region
        $region37: #{tpu_custom_call.1} parent=31 // pred_check
          %p575 = pneg %p106
        $region38: #{tpu_custom_call.1} parent=31 // pred_check_branch
          %577 = sbr.rel (%p575) target = $region40
        $region39: #{tpu_custom_call.1} parent=31 // pred_region
          %s579 = ssub.s32 384, 384
          %580 = vsyncadd %s571, %s579
          %s581 = smul.addr %s20, 3
          %s582 = smul.addr %s581, 128
          %s583 = scalar_lea.hbm %s3, %s582
          %s585 = sshll.u32 %s574, 4
          %s586 = int_to_ptr.vmem [resolvable:$true] %s585
          %588 = dma.vmem_to_hbm [thread:$0]  %s586, 384, %s583, %s571
        $region40: #{tpu_custom_call.1} parent=31 // pred_fallthru
          _
      $region32: #{tpu_custom_call.1} parent=5 // pred_fallthru
        _
      %p589 = scmp.le.s32.totalorder 2, %s15
      // Predicated region
      $region41: #{tpu_custom_call.1} parent=5 // pred_check
        %p590 = pneg %p589
      $region42: #{tpu_custom_call.1} parent=5 // pred_check_branch
        %592 = sbr.rel (%p590) target = $region44
      $region43: #{tpu_custom_call.1} parent=5 // pred_region
        %s593 = ssub.s32 %s15, 2
        // Predicated region
        $region45: #{tpu_custom_call.1} parent=43 // pred_check
          %p594 = pneg %p112
        $region46: #{tpu_custom_call.1} parent=43 // pred_check_branch
          %596 = sbr.rel (%p594) target = $region48
        $region47: #{tpu_custom_call.1} parent=43 // pred_region
          %s597 = sand.u32 %s97, 1
          %s598 = scalar_lea.sflag [#allocation4], %s597
          %s599 = sand.u32 %s97, 1
          %s600 = smul.addr %s599, 24
          %s601 = scalar_lea.vmem [#allocation5], %s600
          %602 = dma.done %s598, 384
        $region48: #{tpu_custom_call.1} parent=43 // pred_fallthru
          _
      $region44: #{tpu_custom_call.1} parent=5 // pred_fallthru
        _
    $region6: #{tpu_custom_call.1} parent=1 // loop_footer
      %s19 = sadd.s32 1, %s15
    $region7: #{tpu_custom_call.1} parent=1 // loop_footer_branch
      %14 = sbr.rel target = $region3
    $region8: #{tpu_custom_call.1} parent=1 // loop_exit
      _
    %603 = vsyncpa [#allocation3], 1
    %s604 = scalar_lea.sflag [#allocation3], 1
    %605 = vsyncpa %s604, 1
    %606 = vsyncpa [#allocation4], 1
    %s607 = scalar_lea.sflag [#allocation4], 1
    %608 = vsyncpa %s607, 1

</llo_original>
